<compile_context>
chip_gen: v5e
topology: v5e:2x2
jax: 0.10.0
libtpu: 0.0.40
codegen_flags: <defaults>
</compile_context>

<pallas_src>
import jax
import jax.numpy as jnp
from jax.experimental import pallas as pl
from jax.experimental.pallas import tpu as pltpu


def _cast_kernel(x_ref, o_ref):
    # The base-class "forward" carries no compute; mirror the .float() cast.
    o_ref[...] = x_ref[...].astype(o_ref.dtype)


def _choose_layout(total_elems: int):
    """Pick a lane-dense (rows, lane) slab layout and a row-tile size.

    Returns (lane, block_rows, padded_rows).  lane is a multiple of 128,
    block_rows a multiple of 32 (sublane-aligned for dtypes down to 8-bit
    packing), padded_rows a multiple of block_rows.
    """
    # Prefer a lane width that divides the flat size exactly (no padding),
    # largest first so stores stay wide; cap at 2048 to bound the per-block
    # VMEM footprint.
    lane = 128
    for cand in (2048, 1024, 512, 256, 128):
        if total_elems >= cand * 8 and total_elems % cand == 0:
            lane = cand
            break
    else:
        for cand in (2048, 1024, 512, 256, 128):
            if total_elems >= cand * 8:
                lane = cand
                break

    rows = pl.cdiv(total_elems, lane)

    # 512 rows x 2048 lanes: in(bf16)+out(f32) double-buffered ~= 12.6 MiB.
    max_block_rows = 512
    if rows <= max_block_rows:
        # Single grid step: round rows up to a multiple of 8 (full vregs).
        block_rows = ((rows + 7) // 8) * 8
    else:
        block_rows = max_block_rows

    padded_rows = pl.cdiv(rows, block_rows) * block_rows
    return lane, block_rows, padded_rows


def value_based_network_forward(state: jax.Array) -> jax.Array:
    """Pallas 'forward' for the abstract ValueBasedNetwork.

    Semantics: identity pass-through of `state`, cast to float32 (the only
    tensor transformation ValueBasedNetwork performs).
    """
    # Fast path: already float32 -> identity, never launch the kernel.
    if state.dtype == jnp.float32:
        return state

    shape = state.shape
    total = 1
    for d in shape:
        total *= int(d)

    if total == 0:
        # Degenerate empty tensor: nothing to copy.
        return state.astype(jnp.float32)

    lane, block_rows, padded_rows = _choose_layout(total)
    padded_total = padded_rows * lane

    flat = state.reshape(-1)
    if padded_total != total:
        flat = jnp.pad(flat, (0, padded_total - total))
    slab = flat.reshape(padded_rows, lane)

    in_bytes = padded_total * jnp.dtype(state.dtype).itemsize
    out_bytes = padded_total * 4

    out_slab = pl.pallas_call(
        _cast_kernel,
        out_shape=jax.ShapeDtypeStruct((padded_rows, lane), jnp.float32),
        grid_spec=pltpu.PrefetchScalarGridSpec(
            num_scalar_prefetch=0,
            grid=(padded_rows // block_rows,),
            in_specs=[pl.BlockSpec((block_rows, lane), lambda i: (i, 0))],
            out_specs=pl.BlockSpec((block_rows, lane), lambda i: (i, 0)),
        ),
        compiler_params=pltpu.CompilerParams(
            dimension_semantics=("parallel",),
            vmem_limit_bytes=32 * 1024 * 1024,
        ),
        cost_estimate=pl.CostEstimate(
            flops=0,
            transcendentals=0,
            bytes_accessed=in_bytes + out_bytes,
        ),
    )(slab)

    out_flat = out_slab.reshape(-1)
    if padded_total != total:
        out_flat = out_flat[:total]
    return out_flat.reshape(shape)


if __name__ == "__main__":
    key = jax.random.PRNGKey(0)

    # Non-float32 state (e.g. half-precision observations) -> exercises the
    # Pallas cast kernel, mirroring the .float() cast in load().
    state_bf16 = jax.random.normal(key, (2, 4, 16, 16), dtype=jnp.bfloat16)
    out = jax.block_until_ready(value_based_network_forward(state_bf16))
    assert out.shape == state_bf16.shape
    assert out.dtype == jnp.float32
    assert bool(jnp.allclose(out, state_bf16.astype(jnp.float32)))

    # Non-tile-aligned flat size -> exercises the pad / unpad path.
    state_odd = jax.random.normal(key, (3, 5, 7), dtype=jnp.bfloat16)
    out_odd = jax.block_until_ready(value_based_network_forward(state_odd))
    assert out_odd.shape == state_odd.shape
    assert out_odd.dtype == jnp.float32
    assert bool(jnp.allclose(out_odd, state_odd.astype(jnp.float32)))

    # float32 state -> short-circuit path (no kernel launch, identity).
    state_f32 = jax.random.normal(key, (2, 4, 16, 16), dtype=jnp.float32)
    out2 = jax.block_until_ready(value_based_network_forward(state_f32))
    assert out2.shape == state_f32.shape
    assert out2.dtype == jnp.float32
    assert bool(jnp.allclose(out2, state_f32))

    print("KERNEL_OK")
</pallas_src>

<mosaic_0001>
module attributes {stable_mosaic.version = 11 : i64} {
  func.func @_cast_kernel(%arg0: i32, %arg1: memref<8x256xbf16, #tpu.memory_space<vmem>>, %arg2: memref<8x256xf32, #tpu.memory_space<vmem>>) attributes {dimension_semantics = [#tpu.dimension_semantics<parallel>], iteration_bounds = array<i64: 1>, scalar_prefetch = 0 : i64, scratch_operands = 0 : i64, tpu.core_type = #tpu.core_type<tc>, window_params = [{transform_indices = @transform_0, window_bounds = array<i64: 8, 256>}, {transform_indices = @transform_1, window_bounds = array<i64: 8, 256>}]} {
    %c0 = arith.constant 0 : index
    %c0_0 = arith.constant 0 : index
    %0 = vector.load %arg1[%c0, %c0_0] : memref<8x256xbf16, #tpu.memory_space<vmem>>, vector<8x256xbf16>
    %1 = arith.extf %0 : vector<8x256xbf16> to vector<8x256xf32>
    %c0_1 = arith.constant 0 : index
    %c0_2 = arith.constant 0 : index
    %2 = vector.load %arg2[%c0_1, %c0_2] : memref<8x256xf32, #tpu.memory_space<vmem>>, vector<8x256xf32>
    tpu.vector_store %arg2[%c0_1, %c0_2], %1 {strides = array<i32>} : memref<8x256xf32, #tpu.memory_space<vmem>>, vector<8x256xf32>,
    return
  }
  func.func @transform_0(%arg0: i32) -> (i32, i32) {
    %c0_i32 = arith.constant 0 : i32
    %c0_i32_0 = arith.constant 0 : i32
    return %arg0, %c0_i32 : i32, i32
  }
  func.func @transform_1(%arg0: i32) -> (i32, i32) {
    %c0_i32 = arith.constant 0 : i32
    %c0_i32_0 = arith.constant 0 : i32
    return %arg0, %c0_i32 : i32, i32
  }
}

</mosaic_0001>

<llo_original>
// kernel: tpu_custom_call.1
$region0: #{tpu_custom_call.1}
  #allocation0 [shape = 'u32[]', space=smem, size = 0x4, offset = 0x4, fixed_abs, tag = 'smem constant byte address 0x4 - core index']
  #allocation1 [shape = 'u32[72,128]{1,0:T(1,128)}', space=vmem, size = 0x9000, scoped, tag = 'internal scratch']
  %s0 = inlined_call_operand.hbm [shape: bf16[8,256], index: 0, kind: input, shape index: {}]
  %s1 = inlined_call_operand.hbm [shape: f32[8,256], index: 1, kind: output, shape index: {}]
  %s2 = sld [smem:[#allocation0]]
  $region18: #{tpu_custom_call.1} parent=0
    _
  %s4 = ssub.s32 1, %s2
  %s5 = scalar_select 0, %s4, %s2
  $region1: #{tpu_custom_call.1} parent=0
    #allocation2 [shape = 'u8[4096]{0}', space=vmem, size = 0x1000, scoped, tag = 'input window, operand 0, single buffered']
    #allocation3 [shape = 's32[1]{0}', space=sflag, size = 0x4, scoped, tag = 'scoped memory for tpu_custom_call.1']
    #allocation4 [shape = 's32[1]{0}', space=sflag, size = 0x4, scoped, tag = 'scoped memory for tpu_custom_call.1']
    #allocation5 [shape = 'u8[8192]{0}', space=vmem, size = 0x2000, scoped, tag = 'output window, operand 0, single buffered']
    %6 = vsyncpa [#allocation3], 0
    %7 = vsyncpa [#allocation4], 0
    // Predicated region
    $region2: #{tpu_custom_call.1} parent=1 // pred_check
      _
    $region3: #{tpu_custom_call.1} parent=1 // pred_check_branch
      %9 = sbr.rel (0) target = $region5
    $region4: #{tpu_custom_call.1} parent=1 // pred_region
      %11 = vsyncadd [#allocation3], 0
      %s13 = sshll.u32 %s0, 4
      %s14 = int_to_ptr.hbm [resolvable:$true] %s13
      %s15 = sshll.u32 [#allocation2], 4
      %s16 = int_to_ptr.vmem [resolvable:$true] %s15
      %18 = dma.hbm_to_vmem [thread:$0]  %s14, 128, %s16, [#allocation3]
    $region5: #{tpu_custom_call.1} parent=1 // pred_fallthru
      _
    // Predicated region
    $region6: #{tpu_custom_call.1} parent=1 // pred_check
      _
    $region7: #{tpu_custom_call.1} parent=1 // pred_check_branch
      %20 = sbr.rel (0) target = $region9
    $region8: #{tpu_custom_call.1} parent=1 // pred_region
      %22 = dma.done [#allocation3], 128
    $region9: #{tpu_custom_call.1} parent=1 // pred_fallthru
      _
    %v23 = vld [vmem:[#allocation2] sm:$0xff]
    %v24 = vunpack.c.l.bf16 %v23
    %v25 = vunpack.c.h.bf16 %v23
    %26 = vst [vmem:[#allocation5] sm:$0xff] %v24
    %27 = vst [vmem:[#allocation5 + $0x8] sm:$0xff] %v25
    // Predicated region
    $region10: #{tpu_custom_call.1} parent=1 // pred_check
      _
    $region11: #{tpu_custom_call.1} parent=1 // pred_check_branch
      %29 = sbr.rel (0) target = $region13
    $region12: #{tpu_custom_call.1} parent=1 // pred_region
      %31 = vsyncadd [#allocation4], 0
      %s33 = sshll.u32 [#allocation5], 4
      %s34 = int_to_ptr.vmem [resolvable:$true] %s33
      %s35 = sshll.u32 %s1, 4
      %s36 = int_to_ptr.hbm [resolvable:$true] %s35
      %38 = dma.vmem_to_hbm [thread:$0]  %s34, 256, %s36, [#allocation4]
    $region13: #{tpu_custom_call.1} parent=1 // pred_fallthru
      _
    // Predicated region
    $region14: #{tpu_custom_call.1} parent=1 // pred_check
      _
    $region15: #{tpu_custom_call.1} parent=1 // pred_check_branch
      %40 = sbr.rel (0) target = $region17
    $region16: #{tpu_custom_call.1} parent=1 // pred_region
      %42 = dma.done [#allocation4], 256
    $region17: #{tpu_custom_call.1} parent=1 // pred_fallthru
      _
    %43 = vsyncpa [#allocation3], 1
    %44 = vsyncpa [#allocation4], 1

</llo_original>
